<compile_context>
chip_gen: v7x
topology: tpu7x:2x2x1
jax: 0.10.0
libtpu: 0.0.40
codegen_flags: <defaults>
</compile_context>

<pallas_src>
import math
import functools

import jax
import jax.numpy as jnp
from jax.experimental import pallas as pl
from jax.experimental.pallas import tpu as pltpu

LANE = 128


def _round_up(x: int, m: int) -> int:
    return (x + m - 1) // m * m


def make_actor_critic_kernel(actor_std: float, action_dim: int, compute_dtype):
    const = math.log(actor_std) + 0.5 * math.log(2.0 * math.pi)
    inv_two_var = 1.0 / (2.0 * actor_std * actor_std)
    A = action_dim

    def kernel(states_ref, actions_ref,
               w1_ref, b1_ref, w2_ref, b2_ref, w3_ref, b3_ref,
               logp_ref, values_ref):
        # Fused actor|critic MLP: three packed, lane-aligned GEMMs on the MXU.
        # Layers 1-2 in compute_dtype (bf16 default), f32 accumulation; layer 3
        # and all log_prob arithmetic in f32 (std amplifies loc error by 5000x).
        x = states_ref[...].astype(compute_dtype)                      # (TM, D)
        h = jnp.dot(x, w1_ref[...], preferred_element_type=jnp.float32) + b1_ref[...]
        h = jnp.maximum(h, 0.0)                                        # (TM, 256) f32
        h = jnp.dot(h.astype(compute_dtype), w2_ref[...],
                    preferred_element_type=jnp.float32) + b2_ref[...]
        h = jnp.maximum(h, 0.0)                                        # (TM, 128) f32
        z = jnp.dot(h, w3_ref[...], preferred_element_type=jnp.float32) + b3_ref[...]
        # z: (TM, 128) f32; cols [0:A] = actor loc, col A = critic value, rest 0.

        # Normal(loc, std) log_prob on the loc lanes (VPU elementwise).
        diff = actions_ref[...] - z[:, :A]                             # (TM, A)
        logp_ref[...] = -(diff * diff) * inv_two_var - const
        values_ref[...] = z[:, A:A + 1]                                # (TM, 1)

    return kernel


def pack_params(params, compute_dtype=jnp.bfloat16):
    """Pack actor+critic weights into three 128-lane-aligned block matrices.

    Layer 1-2 weights are cast to `compute_dtype` (GEMM inputs); biases and the
    final layer stay f32 (f32 MXU accumulation + f32 log_prob math downstream).
    """
    aw1, ab1 = params["aw1"], params["ab1"]
    aw2, ab2 = params["aw2"], params["ab2"]
    aw3, ab3 = params["aw3"], params["ab3"]
    cw1, cb1 = params["cw1"], params["cb1"]
    cw2, cb2 = params["cw2"], params["cb2"]
    cw3, cb3 = params["cw3"], params["cb3"]

    D = aw1.shape[0]
    H1a, H2a = aw1.shape[1], aw2.shape[1]
    H1c, H2c = cw1.shape[1], cw2.shape[1]
    A = aw3.shape[1]

    N1 = _round_up(H1a + H1c, LANE)      # 128 + 64 -> 256
    N2 = _round_up(H2a + H2c, LANE)      #  64 + 32 -> 128
    N3 = _round_up(A + 1, LANE)          #   8 +  1 -> 128
    f32 = jnp.float32

    w1p = (jnp.zeros((D, N1), f32)
           .at[:, :H1a].set(aw1)
           .at[:, H1a:H1a + H1c].set(cw1))
    b1p = (jnp.zeros((1, N1), f32)
           .at[:, :H1a].set(ab1)
           .at[:, H1a:H1a + H1c].set(cb1))

    w2p = (jnp.zeros((N1, N2), f32)
           .at[:H1a, :H2a].set(aw2)
           .at[H1a:H1a + H1c, H2a:H2a + H2c].set(cw2))
    b2p = (jnp.zeros((1, N2), f32)
           .at[:, :H2a].set(ab2)
           .at[:, H2a:H2a + H2c].set(cb2))

    w3p = (jnp.zeros((N2, N3), f32)
           .at[:H2a, :A].set(aw3)
           .at[H2a:H2a + H2c, A:A + 1].set(cw3))
    b3p = (jnp.zeros((1, N3), f32)
           .at[:, :A].set(ab3)
           .at[:, A:A + 1].set(cb3))

    return (w1p.astype(compute_dtype), b1p,
            w2p.astype(compute_dtype), b2p,
            w3p, b3p)


@functools.partial(jax.jit, static_argnames=("actor_std", "block_rows", "compute_dtype"))
def actor_critic_forward(states, actions, params, actor_std=0.01,
                         block_rows=1024, compute_dtype=jnp.bfloat16):
    """Returns (log_probabilities (B, A), values (B, 1), entropy (B, A))."""
    B, D = states.shape
    A = params["aw3"].shape[1]
    assert A + 1 <= LANE, "action_dim + 1 must fit in one 128-lane tile"

    w1p, b1p, w2p, b2p, w3p, b3p = pack_params(params, compute_dtype)

    # No wrapper-side padding of the action width (passed as (B, A)) and no batch
    # padding: the grid is cdiv(B, tm) and Pallas masks the ragged last block.
    # Only a degenerate B < 8 batch is padded up to one (8, ...) sublane group.
    Bp = B
    if B < 8:
        Bp = 8
        states = jnp.pad(states, ((0, Bp - B), (0, 0)))
        actions = jnp.pad(actions, ((0, Bp - B), (0, 0)))

    # tm: multiple of 8, <= block_rows, and capped at ceil(Bp/2) so the
    # "parallel" batch axis has >=2 grid steps (both v7x TensorCores get work).
    block_rows = max(8, (block_rows // 8) * 8)
    tm = max(8, min(block_rows, _round_up(pl.cdiv(Bp, 2), 8)))
    grid = (pl.cdiv(Bp, tm),)

    logp, values = pl.pallas_call(
        make_actor_critic_kernel(actor_std, A, compute_dtype),
        out_shape=(jax.ShapeDtypeStruct((Bp, A), jnp.float32),
                   jax.ShapeDtypeStruct((Bp, 1), jnp.float32)),
        grid=grid,
        in_specs=[
            pl.BlockSpec((tm, D), lambda i: (i, 0)),      # states  (streamed)
            pl.BlockSpec((tm, A), lambda i: (i, 0)),      # actions (streamed, un-padded)
            pl.BlockSpec(w1p.shape, lambda i: (0, 0)),    # weights stay VMEM-resident
            pl.BlockSpec(b1p.shape, lambda i: (0, 0)),
            pl.BlockSpec(w2p.shape, lambda i: (0, 0)),
            pl.BlockSpec(b2p.shape, lambda i: (0, 0)),
            pl.BlockSpec(w3p.shape, lambda i: (0, 0)),
            pl.BlockSpec(b3p.shape, lambda i: (0, 0)),
        ],
        out_specs=(pl.BlockSpec((tm, A), lambda i: (i, 0)),
                   pl.BlockSpec((tm, 1), lambda i: (i, 0))),
        compiler_params=pltpu.CompilerParams(
            dimension_semantics=("parallel",),            # megacore / v7x 2-TC sharding
        ),
    )(states, actions, w1p, b1p, w2p, b2p, w3p, b3p)

    if Bp != B:
        logp, values = logp[:B], values[:B]

    # Entropy of Normal(loc, std) is a constant; broadcast in the wrapper.
    entropy = jnp.full((B, A),
                       0.5 + 0.5 * math.log(2.0 * math.pi) + math.log(actor_std),
                       dtype=jnp.float32)
    return logp, values, entropy


# ----------------------------- setup & reference -----------------------------

def init_linear(key, fan_in, fan_out):
    """PyTorch-like nn.Linear init: U(-1/sqrt(fan_in), 1/sqrt(fan_in)).
    Weight returned as (in_features, out_features)."""
    k = 1.0 / math.sqrt(fan_in)
    kw, kb = jax.random.split(key)
    w = jax.random.uniform(kw, (fan_in, fan_out), jnp.float32, -k, k)
    b = jax.random.uniform(kb, (1, fan_out), jnp.float32, -k, k)
    return w, b


def init_params(key, state_dim, action_dim,
                actor_hidden=(128, 64), critic_hidden=(64, 32)):
    keys = jax.random.split(key, 6)
    aw1, ab1 = init_linear(keys[0], state_dim, actor_hidden[0])
    aw2, ab2 = init_linear(keys[1], actor_hidden[0], actor_hidden[1])
    aw3, ab3 = init_linear(keys[2], actor_hidden[1], action_dim)
    cw1, cb1 = init_linear(keys[3], state_dim, critic_hidden[0])
    cw2, cb2 = init_linear(keys[4], critic_hidden[0], critic_hidden[1])
    cw3, cb3 = init_linear(keys[5], critic_hidden[1], 1)
    return dict(aw1=aw1, ab1=ab1, aw2=aw2, ab2=ab2, aw3=aw3, ab3=ab3,
                cw1=cw1, cb1=cb1, cw2=cw2, cb2=cb2, cw3=cw3, cb3=cb3)


def reference_forward(states, actions, params, actor_std=0.01,
                      compute_dtype=jnp.float32):
    """Pure-JAX reference (torch Normal.log_prob / .entropy / MLP semantics).
    compute_dtype mirrors the kernel's layer-1/2 GEMM precision for matched checks."""
    f32 = jnp.float32

    def dot(a, b):
        return jnp.dot(a.astype(compute_dtype), b.astype(compute_dtype),
                       preferred_element_type=f32)

    h = jnp.maximum(dot(states, params["aw1"]) + params["ab1"], 0.0)
    h = jnp.maximum(dot(h, params["aw2"]) + params["ab2"], 0.0)
    loc = jnp.dot(h, params["aw3"], preferred_element_type=f32) + params["ab3"]
    g = jnp.maximum(dot(states, params["cw1"]) + params["cb1"], 0.0)
    g = jnp.maximum(dot(g, params["cw2"]) + params["cb2"], 0.0)
    v = jnp.dot(g, params["cw3"], preferred_element_type=f32) + params["cb3"]
    logp = (-((actions - loc) ** 2) / (2.0 * actor_std ** 2)
            - math.log(actor_std) - 0.5 * math.log(2.0 * math.pi))
    ent = jnp.full_like(loc, 0.5 + 0.5 * math.log(2.0 * math.pi) + math.log(actor_std))
    return logp, v, ent


if __name__ == "__main__":
    key = jax.random.PRNGKey(0)
    k_params, k_states, k_actions = jax.random.split(key, 3)

    # Small, slightly ragged batch exercises the cdiv-grid / masked last block path.
    B, STATE_DIM, ACTION_DIM = 37, 32, 8
    ACTOR_STD = 0.01

    params = init_params(k_params, STATE_DIM, ACTION_DIM)
    states = jax.random.normal(k_states, (B, STATE_DIM), jnp.float32)
    actions = jax.random.normal(k_actions, (B, ACTION_DIM), jnp.float32) * 0.05

    # 1) Full-f32 path: tight match to the PyTorch module's numerics.
    logp32, values32, entropy = jax.block_until_ready(
        actor_critic_forward(states, actions, params, actor_std=ACTOR_STD,
                             compute_dtype=jnp.float32))
    logp_ref, values_ref, ent_ref = reference_forward(states, actions, params, ACTOR_STD)
    assert logp32.shape == (B, ACTION_DIM) and values32.shape == (B, 1)
    assert entropy.shape == (B, ACTION_DIM)
    assert jnp.allclose(logp32, logp_ref, rtol=1e-4, atol=1e-4)
    assert jnp.allclose(values32, values_ref, rtol=1e-4, atol=1e-5)
    assert jnp.allclose(entropy, ent_ref, rtol=1e-5, atol=1e-6)

    # 2) Default path (bf16 layer-1/2 GEMMs, f32 layer 3 + log_prob math),
    #    verified against a precision-matched reference (std=0.01 amplifies
    #    loc error by 5000x, so a raw-f32 comparison needs looser tolerances).
    logp, values, _ = jax.block_until_ready(
        actor_critic_forward(states, actions, params, actor_std=ACTOR_STD))
    logp_bref, values_bref, _ = reference_forward(states, actions, params, ACTOR_STD,
                                                  compute_dtype=jnp.bfloat16)
    assert logp.shape == (B, ACTION_DIM) and values.shape == (B, 1)
    assert jnp.allclose(logp, logp_bref, rtol=1e-3, atol=0.5)
    assert jnp.allclose(values, values_bref, rtol=1e-3, atol=1e-3)

    print("KERNEL_OK")
</pallas_src>

<mosaic_0001>
module attributes {stable_mosaic.version = 11 : i64} {
  func.func @kernel(%arg0: i32, %arg1: memref<24x32xf32, #tpu.memory_space<vmem>>, %arg2: memref<24x8xf32, #tpu.memory_space<vmem>>, %arg3: memref<32x256xf32, #tpu.memory_space<vmem>>, %arg4: memref<1x256xf32, #tpu.memory_space<vmem>>, %arg5: memref<256x128xf32, #tpu.memory_space<vmem>>, %arg6: memref<1x128xf32, #tpu.memory_space<vmem>>, %arg7: memref<128x128xf32, #tpu.memory_space<vmem>>, %arg8: memref<1x128xf32, #tpu.memory_space<vmem>>, %arg9: memref<24x8xf32, #tpu.memory_space<vmem>>, %arg10: memref<24x1xf32, #tpu.memory_space<vmem>>) attributes {dimension_semantics = [#tpu.dimension_semantics<parallel>], iteration_bounds = array<i64: 2>, scalar_prefetch = 0 : i64, scratch_operands = 0 : i64, tpu.core_type = #tpu.core_type<tc>, window_params = [{transform_indices = @transform_0, window_bounds = array<i64: 24, 32>}, {transform_indices = @transform_1, window_bounds = array<i64: 24, 8>}, {pipeline_mode = #tpu.pipeline_mode<synchronous>, transform_indices = @transform_2, window_bounds = array<i64: 32, 256>}, {pipeline_mode = #tpu.pipeline_mode<synchronous>, transform_indices = @transform_3, window_bounds = array<i64: 1, 256>}, {pipeline_mode = #tpu.pipeline_mode<synchronous>, transform_indices = @transform_4, window_bounds = array<i64: 256, 128>}, {pipeline_mode = #tpu.pipeline_mode<synchronous>, transform_indices = @transform_5, window_bounds = array<i64: 1, 128>}, {pipeline_mode = #tpu.pipeline_mode<synchronous>, transform_indices = @transform_6, window_bounds = array<i64: 128, 128>}, {pipeline_mode = #tpu.pipeline_mode<synchronous>, transform_indices = @transform_7, window_bounds = array<i64: 1, 128>}, {transform_indices = @transform_8, window_bounds = array<i64: 24, 8>}, {transform_indices = @transform_9, window_bounds = array<i64: 24, 1>}]} {
    %c0 = arith.constant 0 : index
    %c0_0 = arith.constant 0 : index
    %0 = vector.load %arg1[%c0, %c0_0] : memref<24x32xf32, #tpu.memory_space<vmem>>, vector<24x32xf32>
    %c0_1 = arith.constant 0 : index
    %c0_2 = arith.constant 0 : index
    %1 = vector.load %arg3[%c0_1, %c0_2] : memref<32x256xf32, #tpu.memory_space<vmem>>, vector<32x256xf32>
    %cst = arith.constant dense<0.000000e+00> : vector<24x256xf32>
    %2 = tpu.matmul %0, %1, %cst {dimension_numbers = #tpu.dot_dimension_numbers<[1], [0], [0], [1], [0, 0, 1, 1], [], []>} : vector<24x32xf32>, vector<32x256xf32>, vector<24x256xf32> -> vector<24x256xf32>
    %c0_3 = arith.constant 0 : index
    %c0_4 = arith.constant 0 : index
    %3 = vector.load %arg4[%c0_3, %c0_4] : memref<1x256xf32, #tpu.memory_space<vmem>>, vector<1x256xf32>
    %4 = vector.broadcast %3 : vector<1x256xf32> to vector<24x256xf32>
    %5 = arith.addf %2, %4 : vector<24x256xf32>
    %cst_5 = arith.constant 0.000000e+00 : f32
    %6 = vector.broadcast %cst_5 : f32 to vector<24x256xf32>
    %7 = arith.maximumf %5, %6 : vector<24x256xf32>
    %c0_6 = arith.constant 0 : index
    %c0_7 = arith.constant 0 : index
    %8 = vector.load %arg5[%c0_6, %c0_7] : memref<256x128xf32, #tpu.memory_space<vmem>>, vector<256x128xf32>
    %cst_8 = arith.constant dense<0.000000e+00> : vector<24x128xf32>
    %9 = tpu.matmul %7, %8, %cst_8 {dimension_numbers = #tpu.dot_dimension_numbers<[1], [0], [0], [1], [0, 0, 1, 1], [], []>} : vector<24x256xf32>, vector<256x128xf32>, vector<24x128xf32> -> vector<24x128xf32>
    %c0_9 = arith.constant 0 : index
    %c0_10 = arith.constant 0 : index
    %10 = vector.load %arg6[%c0_9, %c0_10] : memref<1x128xf32, #tpu.memory_space<vmem>>, vector<1x128xf32>
    %11 = vector.broadcast %10 : vector<1x128xf32> to vector<24x128xf32>
    %12 = arith.addf %9, %11 : vector<24x128xf32>
    %cst_11 = arith.constant 0.000000e+00 : f32
    %13 = vector.broadcast %cst_11 : f32 to vector<24x128xf32>
    %14 = arith.maximumf %12, %13 : vector<24x128xf32>
    %c0_12 = arith.constant 0 : index
    %c0_13 = arith.constant 0 : index
    %15 = vector.load %arg7[%c0_12, %c0_13] : memref<128x128xf32, #tpu.memory_space<vmem>>, vector<128x128xf32>
    %cst_14 = arith.constant dense<0.000000e+00> : vector<24x128xf32>
    %16 = tpu.matmul %14, %15, %cst_14 {dimension_numbers = #tpu.dot_dimension_numbers<[1], [0], [0], [1], [0, 0, 1, 1], [], []>} : vector<24x128xf32>, vector<128x128xf32>, vector<24x128xf32> -> vector<24x128xf32>
    %c0_15 = arith.constant 0 : index
    %c0_16 = arith.constant 0 : index
    %17 = vector.load %arg8[%c0_15, %c0_16] : memref<1x128xf32, #tpu.memory_space<vmem>>, vector<1x128xf32>
    %18 = vector.broadcast %17 : vector<1x128xf32> to vector<24x128xf32>
    %19 = arith.addf %16, %18 : vector<24x128xf32>
    %c0_17 = arith.constant 0 : index
    %c0_18 = arith.constant 0 : index
    %20 = vector.load %arg2[%c0_17, %c0_18] : memref<24x8xf32, #tpu.memory_space<vmem>>, vector<24x8xf32>
    %21 = vector.extract_strided_slice %19 {offsets = [0, 0], sizes = [24, 8], strides = [1, 1]} : vector<24x128xf32> to vector<24x8xf32>
    %22 = arith.subf %20, %21 : vector<24x8xf32>
    %23 = arith.mulf %22, %22 : vector<24x8xf32>
    %cst_19 = arith.constant 0.000000e+00 : f32
    %24 = vector.broadcast %cst_19 : f32 to vector<24x8xf32>
    %25 = arith.subf %24, %23 : vector<24x8xf32>
    %cst_20 = arith.constant 5.000000e+03 : f32
    %26 = vector.broadcast %cst_20 : f32 to vector<24x8xf32>
    %27 = arith.mulf %25, %26 : vector<24x8xf32>
    %cst_21 = arith.constant -3.68623161 : f32
    %28 = vector.broadcast %cst_21 : f32 to vector<24x8xf32>
    %29 = arith.subf %27, %28 : vector<24x8xf32>
    %c0_22 = arith.constant 0 : index
    %c0_23 = arith.constant 0 : index
    %30 = vector.load %arg9[%c0_22, %c0_23] : memref<24x8xf32, #tpu.memory_space<vmem>>, vector<24x8xf32>
    tpu.vector_store %arg9[%c0_22, %c0_23], %29 {strides = array<i32>} : memref<24x8xf32, #tpu.memory_space<vmem>>, vector<24x8xf32>,
    %31 = vector.extract_strided_slice %19 {offsets = [0, 8], sizes = [24, 1], strides = [1, 1]} : vector<24x128xf32> to vector<24x1xf32>
    %c0_24 = arith.constant 0 : index
    %c0_25 = arith.constant 0 : index
    %32 = vector.load %arg10[%c0_24, %c0_25] : memref<24x1xf32, #tpu.memory_space<vmem>>, vector<24x1xf32>
    tpu.vector_store %arg10[%c0_24, %c0_25], %31 {strides = array<i32>} : memref<24x1xf32, #tpu.memory_space<vmem>>, vector<24x1xf32>,
    return
  }
  func.func @transform_0(%arg0: i32) -> (i32, i32) {
    %c0_i32 = arith.constant 0 : i32
    %c0_i32_0 = arith.constant 0 : i32
    return %arg0, %c0_i32 : i32, i32
  }
  func.func @transform_1(%arg0: i32) -> (i32, i32) {
    %c0_i32 = arith.constant 0 : i32
    %c0_i32_0 = arith.constant 0 : i32
    return %arg0, %c0_i32 : i32, i32
  }
  func.func @transform_2(%arg0: i32) -> (i32, i32) {
    %c0_i32 = arith.constant 0 : i32
    %c0_i32_0 = arith.constant 0 : i32
    %c0_i32_1 = arith.constant 0 : i32
    return %c0_i32, %c0_i32_0 : i32, i32
  }
  func.func @transform_3(%arg0: i32) -> (i32, i32) {
    %c0_i32 = arith.constant 0 : i32
    %c0_i32_0 = arith.constant 0 : i32
    %c0_i32_1 = arith.constant 0 : i32
    return %c0_i32, %c0_i32_0 : i32, i32
  }
  func.func @transform_4(%arg0: i32) -> (i32, i32) {
    %c0_i32 = arith.constant 0 : i32
    %c0_i32_0 = arith.constant 0 : i32
    %c0_i32_1 = arith.constant 0 : i32
    return %c0_i32, %c0_i32_0 : i32, i32
  }
  func.func @transform_5(%arg0: i32) -> (i32, i32) {
    %c0_i32 = arith.constant 0 : i32
    %c0_i32_0 = arith.constant 0 : i32
    %c0_i32_1 = arith.constant 0 : i32
    return %c0_i32, %c0_i32_0 : i32, i32
  }
  func.func @transform_6(%arg0: i32) -> (i32, i32) {
    %c0_i32 = arith.constant 0 : i32
    %c0_i32_0 = arith.constant 0 : i32
    %c0_i32_1 = arith.constant 0 : i32
    return %c0_i32, %c0_i32_0 : i32, i32
  }
  func.func @transform_7(%arg0: i32) -> (i32, i32) {
    %c0_i32 = arith.constant 0 : i32
    %c0_i32_0 = arith.constant 0 : i32
    %c0_i32_1 = arith.constant 0 : i32
    return %c0_i32, %c0_i32_0 : i32, i32
  }
  func.func @transform_8(%arg0: i32) -> (i32, i32) {
    %c0_i32 = arith.constant 0 : i32
    %c0_i32_0 = arith.constant 0 : i32
    return %arg0, %c0_i32 : i32, i32
  }
  func.func @transform_9(%arg0: i32) -> (i32, i32) {
    %c0_i32 = arith.constant 0 : i32
    %c0_i32_0 = arith.constant 0 : i32
    return %arg0, %c0_i32 : i32, i32
  }
}

</mosaic_0001>

<llo_original>
// kernel: actor_critic_forward.1
$region0: #{actor_critic_forward.1}
  #allocation0 [shape = 'u32[]', space=smem, size = 0x4, offset = 0x4, fixed_abs, tag = 'smem constant byte address 0x4 - core index']
  #allocation1 [shape = 'u32[144,128]{1,0:T(1,128)}', space=vmem, size = 0x12000, scoped, tag = 'internal scratch']
  %s0 = inlined_call_operand.vmem [shape: f32[37,32], index: 0, kind: input, shape index: {}]
  %s1 = inlined_call_operand.vmem [shape: f32[37,8], index: 1, kind: input, shape index: {}]
  %s2 = inlined_call_operand.vmem [shape: f32[32,256], index: 2, kind: input, shape index: {}]
  %s3 = inlined_call_operand.vmem [shape: f32[1,256], index: 3, kind: input, shape index: {}]
  %s4 = inlined_call_operand.vmem [shape: f32[256,128], index: 4, kind: input, shape index: {}]
  %s5 = inlined_call_operand.vmem [shape: f32[1,128], index: 5, kind: input, shape index: {}]
  %s6 = inlined_call_operand.vmem [shape: f32[128,128], index: 6, kind: input, shape index: {}]
  %s7 = inlined_call_operand.vmem [shape: f32[1,128], index: 7, kind: input, shape index: {}]
  %s8 = inlined_call_operand.vmem [shape: f32[37,8], index: 8, kind: output, shape index: {0}]
  %s9 = inlined_call_operand.vmem [shape: f32[37,1], index: 9, kind: output, shape index: {1}]
  %10 = xla_tuple %s8, %s9
  %s11 = sld [smem:[#allocation0]]
  $region169: #{actor_critic_forward.1} parent=0
    _
  %s13 = ssub.s32 1, %s11
  %s14 = scalar_select 0, %s13, %s11
  $region1: #{actor_critic_forward.1} parent=0
    #allocation2 [shape = 'u8[24576]{0}', space=vmem, size = 0x6000, scoped, tag = 'output window, operand 0']
    #allocation3 [shape = 'u8[24576]{0}', space=vmem, size = 0x6000, scoped, tag = 'output window, operand 1']
    loop: start=0, step=1, limit=4
    $region2: #{actor_critic_forward.1} parent=1 // loop_pre_header
      _
    $region3: #{actor_critic_forward.1} parent=1 // loop_header
      %s16 = sphi 0, %s20
      %p17 = scmp.ge.s32.totalorder %s16, 4
      %s26 = sphi 0, %s28
      %s29 = sphi 0, %s26
      %s30 = sphi 0, %s29
      %s46 = sphi 0, %s30
      %s52 = sphi 0, %s54
      %s55 = sphi 0, %s52
      %s56 = sphi 0, %s55
      %s72 = sphi 0, %s56
      %s76 = sphi 0, %s76
      %s78 = sphi 0, %s76
      %s79 = sphi 0, %s78
      %s93 = sphi 0, %s79
      %s97 = sphi 0, %s97
      %s99 = sphi 0, %s97
      %s100 = sphi 0, %s99
      %s114 = sphi 0, %s100
      %s118 = sphi 0, %s118
      %s120 = sphi 0, %s118
      %s121 = sphi 0, %s120
      %s135 = sphi 0, %s121
      %s139 = sphi 0, %s139
      %s141 = sphi 0, %s139
      %s142 = sphi 0, %s141
      %s156 = sphi 0, %s142
      %s160 = sphi 0, %s160
      %s162 = sphi 0, %s160
      %s163 = sphi 0, %s162
      %s177 = sphi 0, %s163
      %s181 = sphi 0, %s181
      %s183 = sphi 0, %s181
      %s184 = sphi 0, %s183
      %s198 = sphi 0, %s184
      %s204 = sphi 0, %s206
      %s207 = sphi 0, %s204
      %s208 = sphi 0, %s207
      %s224 = sphi 0, %s208
      %s230 = sphi 0, %s232
      %s233 = sphi 0, %s230
      %s234 = sphi 0, %s233
      %s250 = sphi 0, %s234
    $region4: #{actor_critic_forward.1} parent=1 // loop_header_branch
      %19 = sbr.rel (%p17) target = $region8
    $region5: #{actor_critic_forward.1} parent=1 // loop_body
      %s21 = ssub.s32 %s16, 1
      %s22 = ssub.s32 %s16, 2
      %s23 = sadd.s32 %s16, 1
      %s24 = ssub.s32 %s16, %s23
      %p25 = scmp.eq.s32.totalorder %s24, 0
      %s27 = sadd.s32 %s26, 1
      %s28 = scalar_select %p25, %s26, %s27
      %p31 = pneg %p25
      %p32 = scmp.eq.s32.totalorder %s16, 1
      %p33 = por %p31, %p32
      %p34 = scmp.ne.s32.totalorder %s26, %s29
      %p35 = scmp.eq.s32.totalorder %s16, 0
      %p36 = por %p34, %p35
      %p37 = scmp.ne.s32.totalorder %s26, %s29
      %p38 = scmp.eq.s32.totalorder %s21, 1
      %p39 = por %p37, %p38
      %p40 = scmp.ne.s32.totalorder %s29, %s30
      %p41 = scmp.eq.s32.totalorder %s21, 0
      %p42 = por %p40, %p41
      %p43 = scmp.ne.s32.totalorder %s29, %s30
      %p44 = scmp.eq.s32.totalorder %s22, 1
      %p45 = por %p43, %p44
      %p47 = scmp.ne.s32.totalorder %s30, %s46
      %p48 = scmp.eq.s32.totalorder %s22, 0
      %p49 = por %p47, %p48
      %s50 = ssub.s32 %s16, %s23
      %p51 = scmp.eq.s32.totalorder %s50, 0
      %s53 = sadd.s32 %s52, 1
      %s54 = scalar_select %p51, %s52, %s53
      %p57 = pneg %p51
      %p58 = scmp.eq.s32.totalorder %s16, 1
      %p59 = por %p57, %p58
      %p60 = scmp.ne.s32.totalorder %s52, %s55
      %p61 = scmp.eq.s32.totalorder %s16, 0
      %p62 = por %p60, %p61
      %p63 = scmp.ne.s32.totalorder %s52, %s55
      %p64 = scmp.eq.s32.totalorder %s21, 1
      %p65 = por %p63, %p64
      %p66 = scmp.ne.s32.totalorder %s55, %s56
      %p67 = scmp.eq.s32.totalorder %s21, 0
      %p68 = por %p66, %p67
      %p69 = scmp.ne.s32.totalorder %s55, %s56
      %p70 = scmp.eq.s32.totalorder %s22, 1
      %p71 = por %p69, %p70
      %p73 = scmp.ne.s32.totalorder %s56, %s72
      %p74 = scmp.eq.s32.totalorder %s22, 0
      %p75 = por %p73, %p74
      %s77 = sadd.s32 %s76, 1
      %p80 = scmp.eq.s32.totalorder %s16, 1
      %p81 = scmp.ne.s32.totalorder %s76, %s78
      %p82 = scmp.eq.s32.totalorder %s16, 0
      %p83 = por %p81, %p82
      %p84 = scmp.ne.s32.totalorder %s76, %s78
      %p85 = scmp.eq.s32.totalorder %s21, 1
      %p86 = por %p84, %p85
      %p87 = scmp.ne.s32.totalorder %s78, %s79
      %p88 = scmp.eq.s32.totalorder %s21, 0
      %p89 = por %p87, %p88
      %p90 = scmp.ne.s32.totalorder %s78, %s79
      %p91 = scmp.eq.s32.totalorder %s22, 1
      %p92 = por %p90, %p91
      %p94 = scmp.ne.s32.totalorder %s79, %s93
      %p95 = scmp.eq.s32.totalorder %s22, 0
      %p96 = por %p94, %p95
      %s98 = sadd.s32 %s97, 1
      %p101 = scmp.eq.s32.totalorder %s16, 1
      %p102 = scmp.ne.s32.totalorder %s97, %s99
      %p103 = scmp.eq.s32.totalorder %s16, 0
      %p104 = por %p102, %p103
      %p105 = scmp.ne.s32.totalorder %s97, %s99
      %p106 = scmp.eq.s32.totalorder %s21, 1
      %p107 = por %p105, %p106
      %p108 = scmp.ne.s32.totalorder %s99, %s100
      %p109 = scmp.eq.s32.totalorder %s21, 0
      %p110 = por %p108, %p109
      %p111 = scmp.ne.s32.totalorder %s99, %s100
      %p112 = scmp.eq.s32.totalorder %s22, 1
      %p113 = por %p111, %p112
      %p115 = scmp.ne.s32.totalorder %s100, %s114
      %p116 = scmp.eq.s32.totalorder %s22, 0
      %p117 = por %p115, %p116
      %s119 = sadd.s32 %s118, 1
      %p122 = scmp.eq.s32.totalorder %s16, 1
      %p123 = scmp.ne.s32.totalorder %s118, %s120
      %p124 = scmp.eq.s32.totalorder %s16, 0
      %p125 = por %p123, %p124
      %p126 = scmp.ne.s32.totalorder %s118, %s120
      %p127 = scmp.eq.s32.totalorder %s21, 1
      %p128 = por %p126, %p127
      %p129 = scmp.ne.s32.totalorder %s120, %s121
      %p130 = scmp.eq.s32.totalorder %s21, 0
      %p131 = por %p129, %p130
      %p132 = scmp.ne.s32.totalorder %s120, %s121
      %p133 = scmp.eq.s32.totalorder %s22, 1
      %p134 = por %p132, %p133
      %p136 = scmp.ne.s32.totalorder %s121, %s135
      %p137 = scmp.eq.s32.totalorder %s22, 0
      %p138 = por %p136, %p137
      %s140 = sadd.s32 %s139, 1
      %p143 = scmp.eq.s32.totalorder %s16, 1
      %p144 = scmp.ne.s32.totalorder %s139, %s141
      %p145 = scmp.eq.s32.totalorder %s16, 0
      %p146 = por %p144, %p145
      %p147 = scmp.ne.s32.totalorder %s139, %s141
      %p148 = scmp.eq.s32.totalorder %s21, 1
      %p149 = por %p147, %p148
      %p150 = scmp.ne.s32.totalorder %s141, %s142
      %p151 = scmp.eq.s32.totalorder %s21, 0
      %p152 = por %p150, %p151
      %p153 = scmp.ne.s32.totalorder %s141, %s142
      %p154 = scmp.eq.s32.totalorder %s22, 1
      %p155 = por %p153, %p154
      %p157 = scmp.ne.s32.totalorder %s142, %s156
      %p158 = scmp.eq.s32.totalorder %s22, 0
      %p159 = por %p157, %p158
      %s161 = sadd.s32 %s160, 1
      %p164 = scmp.eq.s32.totalorder %s16, 1
      %p165 = scmp.ne.s32.totalorder %s160, %s162
      %p166 = scmp.eq.s32.totalorder %s16, 0
      %p167 = por %p165, %p166
      %p168 = scmp.ne.s32.totalorder %s160, %s162
      %p169 = scmp.eq.s32.totalorder %s21, 1
      %p170 = por %p168, %p169
      %p171 = scmp.ne.s32.totalorder %s162, %s163
      %p172 = scmp.eq.s32.totalorder %s21, 0
      %p173 = por %p171, %p172
      %p174 = scmp.ne.s32.totalorder %s162, %s163
      %p175 = scmp.eq.s32.totalorder %s22, 1
      %p176 = por %p174, %p175
      %p178 = scmp.ne.s32.totalorder %s163, %s177
      %p179 = scmp.eq.s32.totalorder %s22, 0
      %p180 = por %p178, %p179
      %s182 = sadd.s32 %s181, 1
      %p185 = scmp.eq.s32.totalorder %s16, 1
      %p186 = scmp.ne.s32.totalorder %s181, %s183
      %p187 = scmp.eq.s32.totalorder %s16, 0
      %p188 = por %p186, %p187
      %p189 = scmp.ne.s32.totalorder %s181, %s183
      %p190 = scmp.eq.s32.totalorder %s21, 1
      %p191 = por %p189, %p190
      %p192 = scmp.ne.s32.totalorder %s183, %s184
      %p193 = scmp.eq.s32.totalorder %s21, 0
      %p194 = por %p192, %p193
      %p195 = scmp.ne.s32.totalorder %s183, %s184
      %p196 = scmp.eq.s32.totalorder %s22, 1
      %p197 = por %p195, %p196
      %p199 = scmp.ne.s32.totalorder %s184, %s198
      %p200 = scmp.eq.s32.totalorder %s22, 0
      %p201 = por %p199, %p200
      %s202 = ssub.s32 %s16, %s23
      %p203 = scmp.eq.s32.totalorder %s202, 0
      %s205 = sadd.s32 %s204, 1
      %s206 = scalar_select %p203, %s204, %s205
      %p209 = pneg %p203
      %p210 = scmp.eq.s32.totalorder %s16, 1
      %p211 = por %p209, %p210
      %p212 = scmp.ne.s32.totalorder %s204, %s207
      %p213 = scmp.eq.s32.totalorder %s16, 0
      %p214 = por %p212, %p213
      %p215 = scmp.ne.s32.totalorder %s204, %s207
      %p216 = scmp.eq.s32.totalorder %s21, 1
      %p217 = por %p215, %p216
      %p218 = scmp.ne.s32.totalorder %s207, %s208
      %p219 = scmp.eq.s32.totalorder %s21, 0
      %p220 = por %p218, %p219
      %p221 = scmp.ne.s32.totalorder %s207, %s208
      %p222 = scmp.eq.s32.totalorder %s22, 1
      %p223 = por %p221, %p222
      %p225 = scmp.ne.s32.totalorder %s208, %s224
      %p226 = scmp.eq.s32.totalorder %s22, 0
      %p227 = por %p225, %p226
      %s228 = ssub.s32 %s16, %s23
      %p229 = scmp.eq.s32.totalorder %s228, 0
      %s231 = sadd.s32 %s230, 1
      %s232 = scalar_select %p229, %s230, %s231
      %p235 = pneg %p229
      %p236 = scmp.eq.s32.totalorder %s16, 1
      %p237 = por %p235, %p236
      %p238 = scmp.ne.s32.totalorder %s230, %s233
      %p239 = scmp.eq.s32.totalorder %s16, 0
      %p240 = por %p238, %p239
      %p241 = scmp.ne.s32.totalorder %s230, %s233
      %p242 = scmp.eq.s32.totalorder %s21, 1
      %p243 = por %p241, %p242
      %p244 = scmp.ne.s32.totalorder %s233, %s234
      %p245 = scmp.eq.s32.totalorder %s21, 0
      %p246 = por %p244, %p245
      %p247 = scmp.ne.s32.totalorder %s233, %s234
      %p248 = scmp.eq.s32.totalorder %s22, 1
      %p249 = por %p247, %p248
      %p251 = scmp.ne.s32.totalorder %s234, %s250
      %p252 = scmp.eq.s32.totalorder %s22, 0
      %p253 = por %p251, %p252
      %p254 = scmp.le.s32.totalorder 1, %s16
      %p255 = scmp.lt.s32.totalorder %s16, 3
      %p256 = pnand %p254, %p255
      %p257 = pneg %p256
      // Predicated region
      $region9: #{actor_critic_forward.1} parent=5 // pred_check
        _
      $region10: #{actor_critic_forward.1} parent=5 // pred_check_branch
        %259 = sbr.rel (%p256) target = $region12
      $region11: #{actor_critic_forward.1} parent=5 // pred_region
        %s260 = ssub.s32 %s16, 1
        // Predicated region
        $region13: #{actor_critic_forward.1} parent=11 // pred_check
          %p261 = pneg %p89
        $region14: #{actor_critic_forward.1} parent=11 // pred_check_branch
          %263 = sbr.rel (%p261) target = $region16
        $region15: #{actor_critic_forward.1} parent=11 // pred_region
          _
        $region16: #{actor_critic_forward.1} parent=11 // pred_fallthru
          _
        // Predicated region
        $region17: #{actor_critic_forward.1} parent=11 // pred_check
          %p264 = pneg %p110
        $region18: #{actor_critic_forward.1} parent=11 // pred_check_branch
          %266 = sbr.rel (%p264) target = $region20
        $region19: #{actor_critic_forward.1} parent=11 // pred_region
          _
        $region20: #{actor_critic_forward.1} parent=11 // pred_fallthru
          _
        // Predicated region
        $region21: #{actor_critic_forward.1} parent=11 // pred_check
          %p267 = pneg %p131
        $region22: #{actor_critic_forward.1} parent=11 // pred_check_branch
          %269 = sbr.rel (%p267) target = $region24
        $region23: #{actor_critic_forward.1} parent=11 // pred_region
          _
        $region24: #{actor_critic_forward.1} parent=11 // pred_fallthru
          _
        // Predicated region
        $region25: #{actor_critic_forward.1} parent=11 // pred_check
          %p270 = pneg %p152
        $region26: #{actor_critic_forward.1} parent=11 // pred_check_branch
          %272 = sbr.rel (%p270) target = $region28
        $region27: #{actor_critic_forward.1} parent=11 // pred_region
          _
        $region28: #{actor_critic_forward.1} parent=11 // pred_fallthru
          _
        // Predicated region
        $region29: #{actor_critic_forward.1} parent=11 // pred_check
          %p273 = pneg %p173
        $region30: #{actor_critic_forward.1} parent=11 // pred_check_branch
          %275 = sbr.rel (%p273) target = $region32
        $region31: #{actor_critic_forward.1} parent=11 // pred_region
          _
        $region32: #{actor_critic_forward.1} parent=11 // pred_fallthru
          _
        // Predicated region
        $region33: #{actor_critic_forward.1} parent=11 // pred_check
          %p276 = pneg %p194
        $region34: #{actor_critic_forward.1} parent=11 // pred_check_branch
          %278 = sbr.rel (%p276) target = $region36
        $region35: #{actor_critic_forward.1} parent=11 // pred_region
          _
        $region36: #{actor_critic_forward.1} parent=11 // pred_fallthru
          _
      $region12: #{actor_critic_forward.1} parent=5 // pred_fallthru
        _
      %p279 = scmp.lt.s32.totalorder %s16, 2
      // Predicated region
      $region37: #{actor_critic_forward.1} parent=5 // pred_check
        %p280 = pneg %p279
      $region38: #{actor_critic_forward.1} parent=5 // pred_check_branch
        %282 = sbr.rel (%p280) target = $region40
      $region39: #{actor_critic_forward.1} parent=5 // pred_region
        // Predicated region
        $region41: #{actor_critic_forward.1} parent=39 // pred_check
          %p283 = pneg %p36
        $region42: #{actor_critic_forward.1} parent=39 // pred_check_branch
          %285 = sbr.rel (%p283) target = $region44
        $region43: #{actor_critic_forward.1} parent=39 // pred_region
          %s286 = smul.u32 3, %s16
          %s287 = ssub.s32 5, %s286
          %p288 = scmp.lt.s32.totalorder %s287, 3
          %s289 = scalar_select %p288, %s287, 3
          %s290 = smul.u32 128, %s289
          %p291 = scmp.lt.s32.totalorder %s286, 4
          %s292 = scalar_select %p291, %s286, 4
          %s293 = smul.addr %s292, 8
          %s294 = scalar_lea.vmem %s0, %s293
          %s295 = smul.u32 3, %s16
          %s296 = ssub.s32 5, %s295
          %p297 = scmp.lt.s32.totalorder %s296, 3
          %s298 = scalar_select %p297, %s296, 3
          %s299 = smul.u32 128, %s298
        $region44: #{actor_critic_forward.1} parent=39 // pred_fallthru
          _
        // Predicated region
        $region45: #{actor_critic_forward.1} parent=39 // pred_check
          %p300 = pneg %p62
        $region46: #{actor_critic_forward.1} parent=39 // pred_check_branch
          %302 = sbr.rel (%p300) target = $region48
        $region47: #{actor_critic_forward.1} parent=39 // pred_region
          %s303 = smul.u32 3, %s16
          %s304 = ssub.s32 5, %s303
          %p305 = scmp.lt.s32.totalorder %s304, 3
          %s306 = scalar_select %p305, %s304, 3
          %s307 = smul.u32 128, %s306
          %p308 = scmp.lt.s32.totalorder %s303, 4
          %s309 = scalar_select %p308, %s303, 4
          %s310 = smul.addr %s309, 8
          %s311 = scalar_lea.vmem %s1, %s310
          %s312 = smul.u32 3, %s16
          %s313 = ssub.s32 5, %s312
          %p314 = scmp.lt.s32.totalorder %s313, 3
          %s315 = scalar_select %p314, %s313, 3
          %s316 = smul.u32 128, %s315
        $region48: #{actor_critic_forward.1} parent=39 // pred_fallthru
          _
      $region40: #{actor_critic_forward.1} parent=5 // pred_fallthru
        _
      %p317 = scmp.le.s32.totalorder 1, %s16
      %p318 = scmp.lt.s32.totalorder %s16, 3
      %p319 = pnand %p317, %p318
      %p320 = pneg %p319
      // Predicated region
      $region49: #{actor_critic_forward.1} parent=5 // pred_check
        _
      $region50: #{actor_critic_forward.1} parent=5 // pred_check_branch
        %322 = sbr.rel (%p319) target = $region52
      $region51: #{actor_critic_forward.1} parent=5 // pred_region
        %s323 = ssub.s32 %s16, 1
        %s324 = smul.u32 3, %s21
        %s325 = ssub.s32 5, %s324
        %p326 = scmp.lt.s32.totalorder %s325, 3
        %s327 = scalar_select %p326, %s325, 3
        %s328 = smul.u32 128, %s327
        %p329 = scmp.lt.s32.totalorder %s324, 4
        %s330 = scalar_select %p329, %s324, 4
        %s331 = smul.addr %s330, 8
        %s332 = scalar_lea.vmem %s0, %s331
        %p333 = pneg %p42
        %p334 = pneg %p39
        %s335 = smul.u32 3, %s21
        %s336 = ssub.s32 5, %s335
        %p337 = scmp.lt.s32.totalorder %s336, 3
        %s338 = scalar_select %p337, %s336, 3
        %s339 = smul.u32 128, %s338
        %p340 = scmp.lt.s32.totalorder %s335, 4
        %s341 = scalar_select %p340, %s335, 4
        %s342 = smul.addr %s341, 8
        %s343 = scalar_lea.vmem %s1, %s342
        %p344 = pneg %p68
        %p345 = pneg %p65
        %p346 = pneg %p89
        %p347 = pneg %p86
        %p348 = pneg %p110
        %p349 = pneg %p107
        %p350 = pneg %p131
        %p351 = pneg %p128
        %p352 = pneg %p152
        %p353 = pneg %p149
        %p354 = pneg %p173
        %p355 = pneg %p170
        %p356 = pneg %p194
        %p357 = pneg %p191
        %p358 = pneg %p220
        %p359 = pneg %p217
        %s360 = sand.u32 %s207, 1
        %s361 = sand.u32 %s207, 1
        %s362 = smul.addr %s361, 24
        %s363 = scalar_lea.vmem [#allocation2], %s362
        %p364 = pneg %p246
        %p365 = pneg %p243
        %s366 = sand.u32 %s233, 1
        %s367 = sand.u32 %s233, 1
        %s368 = smul.addr %s367, 24
        %s369 = scalar_lea.vmem [#allocation3], %s368
        %s370 = smul.u32 3, %s21
        %s371 = ssub.s32 5, %s370
        %p372 = scmp.lt.s32.totalorder %s371, 3
        %s373 = scalar_select %p372, %s371, 3
        %s374 = smul.u32 128, %s373
        %p375 = scmp.lt.s32.totalorder %s370, 4
        %s376 = scalar_select %p375, %s370, 4
        %s377 = smul.addr %s376, 8
        %s378 = scalar_lea.vmem %s0, %s377
        %s379 = smul.u32 3, %s21
        %s380 = ssub.s32 5, %s379
        %p381 = scmp.lt.s32.totalorder %s380, 3
        %s382 = scalar_select %p381, %s380, 3
        %s383 = smul.u32 128, %s382
        %s384 = smul.u32 3, %s21
        %s385 = ssub.s32 5, %s384
        %p386 = scmp.lt.s32.totalorder %s385, 3
        %s387 = scalar_select %p386, %s385, 3
        %s388 = smul.u32 128, %s387
        %p389 = scmp.lt.s32.totalorder %s384, 4
        %s390 = scalar_select %p389, %s384, 4
        %s391 = smul.addr %s390, 8
        %s392 = scalar_lea.vmem %s1, %s391
        %s393 = smul.u32 3, %s21
        %s394 = ssub.s32 5, %s393
        %p395 = scmp.lt.s32.totalorder %s394, 3
        %s396 = scalar_select %p395, %s394, 3
        %s397 = smul.u32 128, %s396
        %s398 = smul.u32 3, %s21
        %s399 = ssub.s32 5, %s398
        %p400 = scmp.lt.s32.totalorder %s399, 3
        %s401 = scalar_select %p400, %s399, 3
        %s402 = smul.u32 128, %s401
        %s403 = smul.u32 3, %s21
        %s404 = ssub.s32 5, %s403
        %p405 = scmp.lt.s32.totalorder %s404, 3
        %s406 = scalar_select %p405, %s404, 3
        %s407 = smul.u32 128, %s406
        %v408 = vld [vmem:[%s378] sm:$0xff]
        %v409 = vld [vmem:[%s378 + $0x8] sm:$0xff]
        %v410 = vld [vmem:[%s378 + $0x10] sm:$0xff]
        %v411 = vld [vmem:[%s2] sm:$0xff]
        %v412 = vld [vmem:[%s2 + $0x8] sm:$0xff]
        %v413 = vld [vmem:[%s2 + $0x10] sm:$0xff]
        %v414 = vld [vmem:[%s2 + $0x18] sm:$0xff]
        %v415 = vld [vmem:[%s2 + $0x20] sm:$0xff]
        %v416 = vld [vmem:[%s2 + $0x28] sm:$0xff]
        %v417 = vld [vmem:[%s2 + $0x30] sm:$0xff]
        %v418 = vld [vmem:[%s2 + $0x38] sm:$0xff]
        %v419 = vld [vmem:[%s3] sm:$0x3]
        %v421 = vlaneseq
        %v422 = vshrl.u32 %v421, 7
        %v423 = vsub.s32 0, %v422
        %v424 = vrot.slane %v419, %v423
        %v425 = vlaneseq
        %v426 = vshrl.u32 %v425, 7
        %v427 = vsub.s32 1, %v426
        %v428 = vrot.slane %v419, %v427
        %vm431 = vcmask 261120
        %v433 = vsel %vm431, %v408, 0
        %v436 = vsel %vm431, %v409, 0
        %v439 = vsel %vm431, %v410, 0
        %441 = vmatprep.subr.mxu0 %v412
        %442 = vmatpush1.msra.mxu0 %v411
        %443 = vmatprep.subr.mxu0 %v414
        %444 = vmatpush1.msra.mxu0 %v413
        %445 = vmatprep.subr.mxu0 %v416
        %446 = vmatpush1.msra.mxu0 %v415
        %447 = vmatprep.subr.mxu0 %v418
        %448 = vmatpush1.msra.mxu0 %v417
        %449 = vmatprep.subr.mxu0 0.0
        %450 = vmatpush1.msra.mxu0 0.0
        %451 = vmatprep.subr.mxu0 0.0
        %452 = vmatpush1.msra.mxu0 0.0
        %453 = vmatprep.subr.mxu0 0.0
        %454 = vmatpush1.msra.mxu0 0.0
        %455 = vmatprep.subr.mxu0 0.0
        %456 = vmatpush1.msra.mxu0 0.0
        %457 = vmatprep.subr.mxu0 0.0
        %458 = vmatpush1.msra.mxu0 0.0
        %459 = vmatprep.subr.mxu0 0.0
        %460 = vmatpush1.msra.mxu0 0.0
        %461 = vmatprep.subr.mxu0 0.0
        %462 = vmatpush1.msra.mxu0 0.0
        %463 = vmatprep.subr.mxu0 0.0
        %464 = vmatpush1.msra.mxu0 0.0
        %465 = vmatprep.subr.mxu0 0.0
        %466 = vmatpush1.msra.mxu0 0.0
        %467 = vmatprep.subr.mxu0 0.0
        %468 = vmatpush1.msra.mxu0 0.0
        %469 = vmatprep.subr.mxu0 0.0
        %470 = vmatpush1.msra.mxu0 0.0
        %471 = vmatprep.subr.mxu0 0.0
        %472 = vmatpush1.msra.mxu0 0.0
        %473 = vmatprep.subr.mxu0 0.0
        %474 = vmatpush1.msra.mxu0 0.0
        %475 = vmatprep.subr.mxu0 0.0
        %476 = vmatpush1.msra.mxu0 0.0
        %477 = vmatprep.subr.mxu0 0.0
        %478 = vmatpush1.msra.mxu0 0.0
        %479 = vmatprep.subr.mxu0 0.0
        %480 = vmatpush1.msra.mxu0 0.0
        %481 = vmatprep.subr.mxu0 0.0
        %482 = vmatpush1.msra.mxu0 0.0
        %483 = vmatprep.subr.mxu0 0.0
        %484 = vmatpush1.msra.mxu0 0.0
        %485 = vmatprep.subr.mxu0 0.0
        %486 = vmatpush1.msra.mxu0 0.0
        %487 = vmatprep.subr.mxu0 0.0
        %488 = vmatpush1.msra.mxu0 0.0
        %489 = vmatprep.subr.mxu0 0.0
        %490 = vmatpush1.msra.mxu0 0.0
        %491 = vmatprep.subr.mxu0 0.0
        %492 = vmatpush1.msra.mxu0 0.0
        %493 = vmatprep.subr.mxu0 0.0
        %494 = vmatpush1.msra.mxu0 0.0
        %495 = vmatprep.subr.mxu0 0.0
        %496 = vmatpush1.msra.mxu0 0.0
        %497 = vmatprep.subr.mxu0 0.0
        %498 = vmatpush1.msra.mxu0 0.0
        %499 = vmatprep.subr.mxu0 0.0
        %500 = vmatpush1.msra.mxu0 0.0
        %501 = vmatprep.subr.mxu0 0.0
        %502 = vmatpush1.msra.mxu0 0.0
        %503 = vmatprep.subr.mxu0 0.0
        %504 = vmatpush1.msra.mxu0 0.0
        %505 = vmatprep.mubr.f32.mxu0 0.0
        %506 = vmatmul.mubr.f32.gmra.mrb[0].mxu0 %v433
        %v507 = vpop.f32.mrb[0].mxu0
        %v508 = vadd.f32 %v424, %v507
        %v509 = vpop.f32.mrb[0].mxu0
        %v510 = vadd.f32 %v428, %v509
        %511 = vmatprep.mubr.f32.mxu0 0.0
        %512 = vmatmul.mubr.f32.gmra.mrb[0].mxu0 %v436
        %v513 = vpop.f32.mrb[0].mxu0
        %v514 = vadd.f32 %v424, %v513
        %v515 = vpop.f32.mrb[0].mxu0
        %v516 = vadd.f32 %v428, %v515
        %517 = vmatprep.mubr.f32.mxu0 0.0
        %518 = vmatmul.mubr.f32.gmra.mrb[0].mxu0 %v439
        %v519 = vpop.f32.mrb[0].mxu0
        %v520 = vadd.f32 %v424, %v519
        %v521 = vpop.f32.mrb[0].mxu0
        %v522 = vadd.f32 %v428, %v521
        %523 = vdwg.mxu0
        %v524 = vmax.f32 %v508, 0.0
        %v525 = vmax.f32 %v510, 0.0
        %v526 = vmax.f32 %v514, 0.0
        %v527 = vmax.f32 %v516, 0.0
        %v528 = vmax.f32 %v520, 0.0
        %v529 = vmax.f32 %v522, 0.0
        %v530 = vld [vmem:[%s4] sm:$0xff]
        %v531 = vld [vmem:[%s4 + $0x8] sm:$0xff]
        %v532 = vld [vmem:[%s4 + $0x10] sm:$0xff]
        %v533 = vld [vmem:[%s4 + $0x18] sm:$0xff]
        %v534 = vld [vmem:[%s4 + $0x20] sm:$0xff]
        %v535 = vld [vmem:[%s4 + $0x28] sm:$0xff]
        %v536 = vld [vmem:[%s4 + $0x30] sm:$0xff]
        %v537 = vld [vmem:[%s4 + $0x38] sm:$0xff]
        %v538 = vld [vmem:[%s4 + $0x40] sm:$0xff]
        %v539 = vld [vmem:[%s4 + $0x48] sm:$0xff]
        %v540 = vld [vmem:[%s4 + $0x50] sm:$0xff]
        %v541 = vld [vmem:[%s4 + $0x58] sm:$0xff]
        %v542 = vld [vmem:[%s4 + $0x60] sm:$0xff]
        %v543 = vld [vmem:[%s4 + $0x68] sm:$0xff]
        %v544 = vld [vmem:[%s4 + $0x70] sm:$0xff]
        %v545 = vld [vmem:[%s4 + $0x78] sm:$0xff]
        %v546 = vld [vmem:[%s4 + $0x80] sm:$0xff]
        %v547 = vld [vmem:[%s4 + $0x88] sm:$0xff]
        %v548 = vld [vmem:[%s4 + $0x90] sm:$0xff]
        %v549 = vld [vmem:[%s4 + $0x98] sm:$0xff]
        %v550 = vld [vmem:[%s4 + $0xa0] sm:$0xff]
        %v551 = vld [vmem:[%s4 + $0xa8] sm:$0xff]
        %v552 = vld [vmem:[%s4 + $0xb0] sm:$0xff]
        %v553 = vld [vmem:[%s4 + $0xb8] sm:$0xff]
        %v554 = vld [vmem:[%s4 + $0xc0] sm:$0xff]
        %v555 = vld [vmem:[%s4 + $0xc8] sm:$0xff]
        %v556 = vld [vmem:[%s4 + $0xd0] sm:$0xff]
        %v557 = vld [vmem:[%s4 + $0xd8] sm:$0xff]
        %v558 = vld [vmem:[%s4 + $0xe0] sm:$0xff]
        %v559 = vld [vmem:[%s4 + $0xe8] sm:$0xff]
        %v560 = vld [vmem:[%s4 + $0xf0] sm:$0xff]
        %v561 = vld [vmem:[%s4 + $0xf8] sm:$0xff]
        %v562 = vld [vmem:[%s5] sm:$0x1]
        %v564 = vlaneseq
        %v565 = vshrl.u32 %v564, 7
        %v566 = vsub.s32 0, %v565
        %v567 = vrot.slane %v562, %v566
        %569 = vmatprep.subr.mxu0 0.0
        %570 = vmatpush1.msra.mxu0 %v530
        %571 = vmatprep.subr.mxu0 0.0
        %572 = vmatpush1.msra.mxu0 %v531
        %573 = vmatprep.subr.mxu0 0.0
        %574 = vmatpush1.msra.mxu0 %v532
        %575 = vmatprep.subr.mxu0 0.0
        %576 = vmatpush1.msra.mxu0 %v533
        %577 = vmatprep.subr.mxu0 0.0
        %578 = vmatpush1.msra.mxu0 %v534
        %579 = vmatprep.subr.mxu0 0.0
        %580 = vmatpush1.msra.mxu0 %v535
        %581 = vmatprep.subr.mxu0 0.0
        %582 = vmatpush1.msra.mxu0 %v536
        %583 = vmatprep.subr.mxu0 0.0
        %584 = vmatpush1.msra.mxu0 %v537
        %585 = vmatprep.subr.mxu0 0.0
        %586 = vmatpush1.msra.mxu0 %v538
        %587 = vmatprep.subr.mxu0 0.0
        %588 = vmatpush1.msra.mxu0 %v539
        %589 = vmatprep.subr.mxu0 0.0
        %590 = vmatpush1.msra.mxu0 %v540
        %591 = vmatprep.subr.mxu0 0.0
        %592 = vmatpush1.msra.mxu0 %v541
        %593 = vmatprep.subr.mxu0 0.0
        %594 = vmatpush1.msra.mxu0 %v542
        %595 = vmatprep.subr.mxu0 0.0
        %596 = vmatpush1.msra.mxu0 %v543
        %597 = vmatprep.subr.mxu0 0.0
        %598 = vmatpush1.msra.mxu0 %v544
        %599 = vmatprep.subr.mxu0 0.0
        %600 = vmatpush1.msra.mxu0 %v545
        %601 = vmatprep.subr.mxu0 0.0
        %602 = vmatpush1.msra.mxu0 %v546
        %603 = vmatprep.subr.mxu0 0.0
        %604 = vmatpush1.msra.mxu0 %v547
        %605 = vmatprep.subr.mxu0 0.0
        %606 = vmatpush1.msra.mxu0 %v548
        %607 = vmatprep.subr.mxu0 0.0
        %608 = vmatpush1.msra.mxu0 %v549
        %609 = vmatprep.subr.mxu0 0.0
        %610 = vmatpush1.msra.mxu0 %v550
        %611 = vmatprep.subr.mxu0 0.0
        %612 = vmatpush1.msra.mxu0 %v551
        %613 = vmatprep.subr.mxu0 0.0
        %614 = vmatpush1.msra.mxu0 %v552
        %615 = vmatprep.subr.mxu0 0.0
        %616 = vmatpush1.msra.mxu0 %v553
        %617 = vmatprep.subr.mxu0 0.0
        %618 = vmatpush1.msra.mxu0 %v554
        %619 = vmatprep.subr.mxu0 0.0
        %620 = vmatpush1.msra.mxu0 %v555
        %621 = vmatprep.subr.mxu0 0.0
        %622 = vmatpush1.msra.mxu0 %v556
        %623 = vmatprep.subr.mxu0 0.0
        %624 = vmatpush1.msra.mxu0 %v557
        %625 = vmatprep.subr.mxu0 0.0
        %626 = vmatpush1.msra.mxu0 %v558
        %627 = vmatprep.subr.mxu0 0.0
        %628 = vmatpush1.msra.mxu0 %v559
        %629 = vmatprep.subr.mxu0 0.0
        %630 = vmatpush1.msra.mxu0 %v560
        %631 = vmatprep.subr.mxu0 0.0
        %632 = vmatpush1.msra.mxu0 %v561
        %633 = vmatprep.mubr.f32.mxu0 %v525
        %634 = vmatmul.mubr.f32.gmra.mrb[0].mxu0 %v524
        %v635 = vpop.f32.mrb[0].mxu0
        %v636 = vadd.f32 %v567, %v635
        %v637 = vpop.f32.mrb[0].mxu0
        %638 = vmatprep.mubr.f32.mxu0 %v527
        %639 = vmatmul.mubr.f32.gmra.mrb[0].mxu0 %v526
        %v640 = vpop.f32.mrb[0].mxu0
        %v641 = vadd.f32 %v567, %v640
        %v642 = vpop.f32.mrb[0].mxu0
        %643 = vmatprep.mubr.f32.mxu0 %v529
        %644 = vmatmul.mubr.f32.gmra.mrb[0].mxu0 %v528
        %v645 = vpop.f32.mrb[0].mxu0
        %v646 = vadd.f32 %v567, %v645
        %v647 = vpop.f32.mrb[0].mxu0
        %648 = vdwg.mxu0
        %v649 = vmax.f32 %v636, 0.0
        %v650 = vmax.f32 %v641, 0.0
        %v651 = vmax.f32 %v646, 0.0
        %v652 = vld [vmem:[%s6] sm:$0xff]
        %v653 = vld [vmem:[%s6 + $0x8] sm:$0xff]
        %v654 = vld [vmem:[%s6 + $0x10] sm:$0xff]
        %v655 = vld [vmem:[%s6 + $0x18] sm:$0xff]
        %v656 = vld [vmem:[%s6 + $0x20] sm:$0xff]
        %v657 = vld [vmem:[%s6 + $0x28] sm:$0xff]
        %v658 = vld [vmem:[%s6 + $0x30] sm:$0xff]
        %v659 = vld [vmem:[%s6 + $0x38] sm:$0xff]
        %v660 = vld [vmem:[%s6 + $0x40] sm:$0xff]
        %v661 = vld [vmem:[%s6 + $0x48] sm:$0xff]
        %v662 = vld [vmem:[%s6 + $0x50] sm:$0xff]
        %v663 = vld [vmem:[%s6 + $0x58] sm:$0xff]
        %v664 = vld [vmem:[%s6 + $0x60] sm:$0xff]
        %v665 = vld [vmem:[%s6 + $0x68] sm:$0xff]
        %v666 = vld [vmem:[%s6 + $0x70] sm:$0xff]
        %v667 = vld [vmem:[%s6 + $0x78] sm:$0xff]
        %v668 = vld [vmem:[%s7] sm:$0x1]
        %v670 = vlaneseq
        %v671 = vshrl.u32 %v670, 7
        %v672 = vsub.s32 0, %v671
        %v673 = vrot.slane %v668, %v672
        %675 = vmatprep.subr.mxu0 0.0
        %676 = vmatpush1.msra.mxu0 %v652
        %677 = vmatprep.subr.mxu0 0.0
        %678 = vmatpush1.msra.mxu0 %v653
        %679 = vmatprep.subr.mxu0 0.0
        %680 = vmatpush1.msra.mxu0 %v654
        %681 = vmatprep.subr.mxu0 0.0
        %682 = vmatpush1.msra.mxu0 %v655
        %683 = vmatprep.subr.mxu0 0.0
        %684 = vmatpush1.msra.mxu0 %v656
        %685 = vmatprep.subr.mxu0 0.0
        %686 = vmatpush1.msra.mxu0 %v657
        %687 = vmatprep.subr.mxu0 0.0
        %688 = vmatpush1.msra.mxu0 %v658
        %689 = vmatprep.subr.mxu0 0.0
        %690 = vmatpush1.msra.mxu0 %v659
        %691 = vmatprep.subr.mxu0 0.0
        %692 = vmatpush1.msra.mxu0 %v660
        %693 = vmatprep.subr.mxu0 0.0
        %694 = vmatpush1.msra.mxu0 %v661
        %695 = vmatprep.subr.mxu0 0.0
        %696 = vmatpush1.msra.mxu0 %v662
        %697 = vmatprep.subr.mxu0 0.0
        %698 = vmatpush1.msra.mxu0 %v663
        %699 = vmatprep.subr.mxu0 0.0
        %700 = vmatpush1.msra.mxu0 %v664
        %701 = vmatprep.subr.mxu0 0.0
        %702 = vmatpush1.msra.mxu0 %v665
        %703 = vmatprep.subr.mxu0 0.0
        %704 = vmatpush1.msra.mxu0 %v666
        %705 = vmatprep.subr.mxu0 0.0
        %706 = vmatpush1.msra.mxu0 %v667
        %707 = vmatprep.subr.mxu0 0.0
        %708 = vmatpush1.msra.mxu0 0.0
        %709 = vmatprep.subr.mxu0 0.0
        %710 = vmatpush1.msra.mxu0 0.0
        %711 = vmatprep.subr.mxu0 0.0
        %712 = vmatpush1.msra.mxu0 0.0
        %713 = vmatprep.subr.mxu0 0.0
        %714 = vmatpush1.msra.mxu0 0.0
        %715 = vmatprep.subr.mxu0 0.0
        %716 = vmatpush1.msra.mxu0 0.0
        %717 = vmatprep.subr.mxu0 0.0
        %718 = vmatpush1.msra.mxu0 0.0
        %719 = vmatprep.subr.mxu0 0.0
        %720 = vmatpush1.msra.mxu0 0.0
        %721 = vmatprep.subr.mxu0 0.0
        %722 = vmatpush1.msra.mxu0 0.0
        %723 = vmatprep.subr.mxu0 0.0
        %724 = vmatpush1.msra.mxu0 0.0
        %725 = vmatprep.subr.mxu0 0.0
        %726 = vmatpush1.msra.mxu0 0.0
        %727 = vmatprep.subr.mxu0 0.0
        %728 = vmatpush1.msra.mxu0 0.0
        %729 = vmatprep.subr.mxu0 0.0
        %730 = vmatpush1.msra.mxu0 0.0
        %731 = vmatprep.subr.mxu0 0.0
        %732 = vmatpush1.msra.mxu0 0.0
        %733 = vmatprep.subr.mxu0 0.0
        %734 = vmatpush1.msra.mxu0 0.0
        %735 = vmatprep.subr.mxu0 0.0
        %736 = vmatpush1.msra.mxu0 0.0
        %737 = vmatprep.subr.mxu0 0.0
        %738 = vmatpush1.msra.mxu0 0.0
        %739 = vmatprep.mubr.f32.mxu0 0.0
        %740 = vmatmul.mubr.f32.gmra.mrb[0].mxu0 %v649
        %v741 = vpop.f32.mrb[0].mxu0
        %v742 = vadd.f32 %v673, %v741
        %v743 = vpop.f32.mrb[0].mxu0
        %744 = vmatprep.mubr.f32.mxu0 0.0
        %745 = vmatmul.mubr.f32.gmra.mrb[0].mxu0 %v650
        %v746 = vpop.f32.mrb[0].mxu0
        %v747 = vadd.f32 %v673, %v746
        %v748 = vpop.f32.mrb[0].mxu0
        %749 = vmatprep.mubr.f32.mxu0 0.0
        %750 = vmatmul.mubr.f32.gmra.mrb[0].mxu0 %v651
        %v751 = vpop.f32.mrb[0].mxu0
        %v752 = vadd.f32 %v673, %v751
        %v753 = vpop.f32.mrb[0].mxu0
        %754 = vdwg.mxu0
        %v755 = vld [vmem:[%s392] sm:$0xff]
        %v756 = vld [vmem:[%s392 + $0x8] sm:$0xff]
        %v757 = vld [vmem:[%s392 + $0x10] sm:$0xff]
        %v758 = vsub.f32 %v755, %v742
        %v759 = vsub.f32 %v756, %v747
        %v760 = vsub.f32 %v757, %v752
        %v761 = vmul.f32 %v758, %v758
        %v762 = vmul.f32 %v759, %v759
        %v763 = vmul.f32 %v760, %v760
        %v764 = vsub.f32 0.0, %v761
        %v765 = vsub.f32 0.0, %v762
        %v766 = vsub.f32 0.0, %v763
        %v767 = vmul.f32 %v764, 5000.0
        %v768 = vmul.f32 %v765, 5000.0
        %v769 = vmul.f32 %v766, 5000.0
        %v770 = vsub.f32 %v767, -3.6862316
        %v771 = vsub.f32 %v768, -3.6862316
        %v772 = vsub.f32 %v769, -3.6862316
        %vm773 = vcmask 64512
        %774 = vst.msk [vmem:[%s363] sm:$0xff] %vm773, %v770
        %775 = vst.msk [vmem:[%s363 + $0x8] sm:$0xff] %vm773, %v771
        %776 = vst.msk [vmem:[%s363 + $0x10] sm:$0xff] %vm773, %v772
        %780 = vrot.lane.b32.xlu0 %v742, 120
        %v781 = vpop.permute.xlu0 %780
        %782 = vrot.lane.b32.xlu0 %v747, 120
        %v783 = vpop.permute.xlu0 %782
        %784 = vrot.lane.b32.xlu0 %v752, 120
        %v785 = vpop.permute.xlu0 %784
        %vm789 = vcmask 7168
        %790 = vst.msk [vmem:[%s369] sm:$0xff] %vm789, %v781
        %791 = vst.msk [vmem:[%s369 + $0x8] sm:$0xff] %vm789, %v783
        %792 = vst.msk [vmem:[%s369 + $0x10] sm:$0xff] %vm789, %v785
        %s793 = sand.u32 %s207, 1
        %s794 = sand.u32 %s207, 1
        %s795 = smul.addr %s794, 24
        %s796 = scalar_lea.vmem [#allocation2], %s795
        %s797 = sand.u32 %s233, 1
        %s798 = sand.u32 %s233, 1
        %s799 = smul.addr %s798, 24
        %s800 = scalar_lea.vmem [#allocation3], %s799
        // Predicated region
        $region53: #{actor_critic_forward.1} parent=51 // pred_check
          %p801 = pneg %p217
        $region54: #{actor_critic_forward.1} parent=51 // pred_check_branch
          %803 = sbr.rel (%p801) target = $region56
        $region55: #{actor_critic_forward.1} parent=51 // pred_region
          %s804 = smul.u32 3, %s21
          %s805 = ssub.s32 5, %s804
          %p806 = scmp.lt.s32.totalorder %s805, 3
          %s807 = scalar_select %p806, %s805, 3
          %s808 = smul.u32 128, %s807
          %p809 = scmp.ne.s32.totalorder 0, %s808
          %s810 = smul.addr %s804, 8
          %s811 = scalar_lea.vmem %s8, %s810
          // Predicated region
          $region57: #{actor_critic_forward.1} parent=55 // pred_check
            %p812 = pneg %p809
          $region58: #{actor_critic_forward.1} parent=55 // pred_check_branch
            %814 = sbr.rel (%p812) target = $region60
          $region59: #{actor_critic_forward.1} parent=55 // pred_region
            // Predicated region
            $region61: #{actor_critic_forward.1} parent=59 // pred_check
              _
            $region62: #{actor_critic_forward.1} parent=59 // pred_check_branch
              %816 = sbr.rel (0) target = $region64
            $region63: #{actor_critic_forward.1} parent=59 // pred_region
              // Predicated region
              $region83: #{actor_critic_forward.1} parent=63 // pred_check
                _
              $region84: #{actor_critic_forward.1} parent=63 // pred_check_branch
                %870 = sbr.rel (0) target = $region86
              $region85: #{actor_critic_forward.1} parent=63 // pred_region
                %s871 = sdiv.u32.pop %s807, 3
                %s872 = srem.u32.pop %s807, 3
                // While loop
                $region87: #{actor_critic_forward.1} parent=85 // loop_pre_header
                  _
                $region88: #{actor_critic_forward.1} parent=85 // loop_header
                  %s874 = sphi 0, %s876
                  %p875 = scmp.ge.s32.totalorder %s874, %s871
                  %s879 = sphi 0, %s890
                  %s880 = sphi %s796, %s893
                  %s881 = sphi %s811, %s894
                $region89: #{actor_critic_forward.1} parent=85 // loop_header_branch
                  %878 = sbr.rel (%p875) target = $region93
                $region90: #{actor_critic_forward.1} parent=85 // loop_body
                  %v882 = vld [vmem:[%s880] sm:$0xff]
                  %883 = vst [vmem:[%s881] sm:$0xff] %v882
                  %v884 = vld [vmem:[%s880 + $0x8] sm:$0xff]
                  %885 = vst [vmem:[%s881 + $0x8] sm:$0xff] %v884
                  %v886 = vld [vmem:[%s880 + $0x10] sm:$0xff]
                  %887 = vst [vmem:[%s881 + $0x10] sm:$0xff] %v886
                  %s888 = sadd.s32 1, %s879
                  %p889 = scmp.ge.s32.totalorder %s888, %s871
                  %s890 = scalar_select %p889, 0, %s888
                  %s891 = smul.u32 %s890, 24
                  %s892 = smul.u32 %s890, 24
                  %s893 = scalar_lea.vmem %s796, %s891 [#allocation2]
                  %s894 = scalar_lea.vmem %s811, %s892
                $region91: #{actor_critic_forward.1} parent=85 // loop_footer
                  %s876 = sadd.s32 %s874, 1
                $region92: #{actor_critic_forward.1} parent=85 // loop_footer_branch
                  %873 = sbr.rel target = $region88
                $region93: #{actor_critic_forward.1} parent=85 // loop_exit
                  _
                %s895 = sdiv.u32.pop %s807, 3
                %s896 = srem.u32.pop %s807, 3
                %s897 = smul.u32 %s895, 3
                %s898 = smul.u32 8, %s897
                %s899 = scalar_lea.vmem %s796, %s898 [#allocation2]
                %s900 = smul.u32 8, %s897
                %s901 = scalar_lea.vmem %s811, %s900
                // While loop
                $region94: #{actor_critic_forward.1} parent=85 // loop_pre_header
                  _
                $region95: #{actor_critic_forward.1} parent=85 // loop_header
                  %s903 = sphi 0, %s905
                  %p904 = scmp.ge.s32.totalorder %s903, %s896
                  %s908 = sphi 0, %s915
                  %s909 = sphi %s899, %s918
                  %s910 = sphi %s901, %s919
                $region96: #{actor_critic_forward.1} parent=85 // loop_header_branch
                  %907 = sbr.rel (%p904) target = $region100
                $region97: #{actor_critic_forward.1} parent=85 // loop_body
                  %v911 = vld [vmem:[%s909] sm:$0xff]
                  %912 = vst [vmem:[%s910] sm:$0xff] %v911
                  %s913 = sadd.s32 1, %s908
                  %p914 = scmp.ge.s32.totalorder %s913, %s896
                  %s915 = scalar_select %p914, 0, %s913
                  %s916 = smul.u32 %s915, 8
                  %s917 = smul.u32 %s915, 8
                  %s918 = scalar_lea.vmem %s899, %s916 [#allocation2]
                  %s919 = scalar_lea.vmem %s901, %s917
                $region98: #{actor_critic_forward.1} parent=85 // loop_footer
                  %s905 = sadd.s32 %s903, 1
                $region99: #{actor_critic_forward.1} parent=85 // loop_footer_branch
                  %902 = sbr.rel target = $region95
                $region100: #{actor_critic_forward.1} parent=85 // loop_exit
                  _
              $region86: #{actor_critic_forward.1} parent=63 // pred_fallthru
                _
              // Predicated region
              $region101: #{actor_critic_forward.1} parent=63 // pred_check
                _
              $region102: #{actor_critic_forward.1} parent=63 // pred_check_branch
                %921 = sbr.rel target = $region104
              $region103: #{actor_critic_forward.1} parent=63 // pred_region
                _
              $region104: #{actor_critic_forward.1} parent=63 // pred_fallthru
                _
            $region64: #{actor_critic_forward.1} parent=59 // pred_fallthru
              _
            // Predicated region
            $region65: #{actor_critic_forward.1} parent=59 // pred_check
              _
            $region66: #{actor_critic_forward.1} parent=59 // pred_check_branch
              %818 = sbr.rel target = $region68
            $region67: #{actor_critic_forward.1} parent=59 // pred_region
              %s820 = sdiv.u32.pop %s807, 3
              %s821 = srem.u32.pop %s807, 3
              // While loop
              $region69: #{actor_critic_forward.1} parent=67 // loop_pre_header
                _
              $region70: #{actor_critic_forward.1} parent=67 // loop_header
                %s823 = sphi 0, %s825
                %p824 = scmp.ge.s32.totalorder %s823, %s820
                %s828 = sphi 0, %s839
                %s829 = sphi %s796, %s842
                %s830 = sphi %s811, %s843
              $region71: #{actor_critic_forward.1} parent=67 // loop_header_branch
                %827 = sbr.rel (%p824) target = $region75
              $region72: #{actor_critic_forward.1} parent=67 // loop_body
                %v831 = vld [vmem:[%s829] sm:$0xff]
                %832 = vst [vmem:[%s830] sm:$0xff] %v831
                %v833 = vld [vmem:[%s829 + $0x8] sm:$0xff]
                %834 = vst [vmem:[%s830 + $0x8] sm:$0xff] %v833
                %v835 = vld [vmem:[%s829 + $0x10] sm:$0xff]
                %836 = vst [vmem:[%s830 + $0x10] sm:$0xff] %v835
                %s837 = sadd.s32 1, %s828
                %p838 = scmp.ge.s32.totalorder %s837, %s820
                %s839 = scalar_select %p838, 0, %s837
                %s840 = smul.u32 %s839, 24
                %s841 = smul.u32 %s839, 24
                %s842 = scalar_lea.vmem %s796, %s840 [#allocation2]
                %s843 = scalar_lea.vmem %s811, %s841
              $region73: #{actor_critic_forward.1} parent=67 // loop_footer
                %s825 = sadd.s32 %s823, 1
              $region74: #{actor_critic_forward.1} parent=67 // loop_footer_branch
                %822 = sbr.rel target = $region70
              $region75: #{actor_critic_forward.1} parent=67 // loop_exit
                _
              %s844 = sdiv.u32.pop %s807, 3
              %s845 = srem.u32.pop %s807, 3
              %s846 = smul.u32 %s844, 3
              %s847 = smul.u32 8, %s846
              %s848 = scalar_lea.vmem %s796, %s847 [#allocation2]
              %s849 = smul.u32 8, %s846
              %s850 = scalar_lea.vmem %s811, %s849
              // While loop
              $region76: #{actor_critic_forward.1} parent=67 // loop_pre_header
                _
              $region77: #{actor_critic_forward.1} parent=67 // loop_header
                %s852 = sphi 0, %s854
                %p853 = scmp.ge.s32.totalorder %s852, %s845
                %s857 = sphi 0, %s864
                %s858 = sphi %s848, %s867
                %s859 = sphi %s850, %s868
              $region78: #{actor_critic_forward.1} parent=67 // loop_header_branch
                %856 = sbr.rel (%p853) target = $region82
              $region79: #{actor_critic_forward.1} parent=67 // loop_body
                %v860 = vld [vmem:[%s858] sm:$0xff]
                %861 = vst [vmem:[%s859] sm:$0xff] %v860
                %s862 = sadd.s32 1, %s857
                %p863 = scmp.ge.s32.totalorder %s862, %s845
                %s864 = scalar_select %p863, 0, %s862
                %s865 = smul.u32 %s864, 8
                %s866 = smul.u32 %s864, 8
                %s867 = scalar_lea.vmem %s848, %s865 [#allocation2]
                %s868 = scalar_lea.vmem %s850, %s866
              $region80: #{actor_critic_forward.1} parent=67 // loop_footer
                %s854 = sadd.s32 %s852, 1
              $region81: #{actor_critic_forward.1} parent=67 // loop_footer_branch
                %851 = sbr.rel target = $region77
              $region82: #{actor_critic_forward.1} parent=67 // loop_exit
                _
            $region68: #{actor_critic_forward.1} parent=59 // pred_fallthru
              _
          $region60: #{actor_critic_forward.1} parent=55 // pred_fallthru
            _
          %922 = vnop
        $region56: #{actor_critic_forward.1} parent=51 // pred_fallthru
          _
        // Predicated region
        $region105: #{actor_critic_forward.1} parent=51 // pred_check
          %p923 = pneg %p243
        $region106: #{actor_critic_forward.1} parent=51 // pred_check_branch
          %925 = sbr.rel (%p923) target = $region108
        $region107: #{actor_critic_forward.1} parent=51 // pred_region
          %s926 = smul.u32 3, %s21
          %s927 = ssub.s32 5, %s926
          %p928 = scmp.lt.s32.totalorder %s927, 3
          %s929 = scalar_select %p928, %s927, 3
          %s930 = smul.u32 128, %s929
          %p931 = scmp.ne.s32.totalorder 0, %s930
          %s932 = smul.addr %s926, 8
          %s933 = scalar_lea.vmem %s9, %s932
          // Predicated region
          $region109: #{actor_critic_forward.1} parent=107 // pred_check
            %p934 = pneg %p931
          $region110: #{actor_critic_forward.1} parent=107 // pred_check_branch
            %936 = sbr.rel (%p934) target = $region112
          $region111: #{actor_critic_forward.1} parent=107 // pred_region
            // Predicated region
            $region113: #{actor_critic_forward.1} parent=111 // pred_check
              _
            $region114: #{actor_critic_forward.1} parent=111 // pred_check_branch
              %938 = sbr.rel (0) target = $region116
            $region115: #{actor_critic_forward.1} parent=111 // pred_region
              // Predicated region
              $region135: #{actor_critic_forward.1} parent=115 // pred_check
                _
              $region136: #{actor_critic_forward.1} parent=115 // pred_check_branch
                %992 = sbr.rel (0) target = $region138
              $region137: #{actor_critic_forward.1} parent=115 // pred_region
                %s993 = sdiv.u32.pop %s929, 3
                %s994 = srem.u32.pop %s929, 3
                // While loop
                $region139: #{actor_critic_forward.1} parent=137 // loop_pre_header
                  _
                $region140: #{actor_critic_forward.1} parent=137 // loop_header
                  %s996 = sphi 0, %s998
                  %p997 = scmp.ge.s32.totalorder %s996, %s993
                  %s1001 = sphi 0, %s1012
                  %s1002 = sphi %s800, %s1015
                  %s1003 = sphi %s933, %s1016
                $region141: #{actor_critic_forward.1} parent=137 // loop_header_branch
                  %1000 = sbr.rel (%p997) target = $region145
                $region142: #{actor_critic_forward.1} parent=137 // loop_body
                  %v1004 = vld [vmem:[%s1002] sm:$0xff]
                  %1005 = vst [vmem:[%s1003] sm:$0xff] %v1004
                  %v1006 = vld [vmem:[%s1002 + $0x8] sm:$0xff]
                  %1007 = vst [vmem:[%s1003 + $0x8] sm:$0xff] %v1006
                  %v1008 = vld [vmem:[%s1002 + $0x10] sm:$0xff]
                  %1009 = vst [vmem:[%s1003 + $0x10] sm:$0xff] %v1008
                  %s1010 = sadd.s32 1, %s1001
                  %p1011 = scmp.ge.s32.totalorder %s1010, %s993
                  %s1012 = scalar_select %p1011, 0, %s1010
                  %s1013 = smul.u32 %s1012, 24
                  %s1014 = smul.u32 %s1012, 24
                  %s1015 = scalar_lea.vmem %s800, %s1013 [#allocation3]
                  %s1016 = scalar_lea.vmem %s933, %s1014
                $region143: #{actor_critic_forward.1} parent=137 // loop_footer
                  %s998 = sadd.s32 %s996, 1
                $region144: #{actor_critic_forward.1} parent=137 // loop_footer_branch
                  %995 = sbr.rel target = $region140
                $region145: #{actor_critic_forward.1} parent=137 // loop_exit
                  _
                %s1017 = sdiv.u32.pop %s929, 3
                %s1018 = srem.u32.pop %s929, 3
                %s1019 = smul.u32 %s1017, 3
                %s1020 = smul.u32 8, %s1019
                %s1021 = scalar_lea.vmem %s800, %s1020 [#allocation3]
                %s1022 = smul.u32 8, %s1019
                %s1023 = scalar_lea.vmem %s933, %s1022
                // While loop
                $region146: #{actor_critic_forward.1} parent=137 // loop_pre_header
                  _
                $region147: #{actor_critic_forward.1} parent=137 // loop_header
                  %s1025 = sphi 0, %s1027
                  %p1026 = scmp.ge.s32.totalorder %s1025, %s1018
                  %s1030 = sphi 0, %s1037
                  %s1031 = sphi %s1021, %s1040
                  %s1032 = sphi %s1023, %s1041
                $region148: #{actor_critic_forward.1} parent=137 // loop_header_branch
                  %1029 = sbr.rel (%p1026) target = $region152
                $region149: #{actor_critic_forward.1} parent=137 // loop_body
                  %v1033 = vld [vmem:[%s1031] sm:$0xff]
                  %1034 = vst [vmem:[%s1032] sm:$0xff] %v1033
                  %s1035 = sadd.s32 1, %s1030
                  %p1036 = scmp.ge.s32.totalorder %s1035, %s1018
                  %s1037 = scalar_select %p1036, 0, %s1035
                  %s1038 = smul.u32 %s1037, 8
                  %s1039 = smul.u32 %s1037, 8
                  %s1040 = scalar_lea.vmem %s1021, %s1038 [#allocation3]
                  %s1041 = scalar_lea.vmem %s1023, %s1039
                $region150: #{actor_critic_forward.1} parent=137 // loop_footer
                  %s1027 = sadd.s32 %s1025, 1
                $region151: #{actor_critic_forward.1} parent=137 // loop_footer_branch
                  %1024 = sbr.rel target = $region147
                $region152: #{actor_critic_forward.1} parent=137 // loop_exit
                  _
              $region138: #{actor_critic_forward.1} parent=115 // pred_fallthru
                _
              // Predicated region
              $region153: #{actor_critic_forward.1} parent=115 // pred_check
                _
              $region154: #{actor_critic_forward.1} parent=115 // pred_check_branch
                %1043 = sbr.rel target = $region156
              $region155: #{actor_critic_forward.1} parent=115 // pred_region
                _
              $region156: #{actor_critic_forward.1} parent=115 // pred_fallthru
                _
            $region116: #{actor_critic_forward.1} parent=111 // pred_fallthru
              _
            // Predicated region
            $region117: #{actor_critic_forward.1} parent=111 // pred_check
              _
            $region118: #{actor_critic_forward.1} parent=111 // pred_check_branch
              %940 = sbr.rel target = $region120
            $region119: #{actor_critic_forward.1} parent=111 // pred_region
              %s942 = sdiv.u32.pop %s929, 3
              %s943 = srem.u32.pop %s929, 3
              // While loop
              $region121: #{actor_critic_forward.1} parent=119 // loop_pre_header
                _
              $region122: #{actor_critic_forward.1} parent=119 // loop_header
                %s945 = sphi 0, %s947
                %p946 = scmp.ge.s32.totalorder %s945, %s942
                %s950 = sphi 0, %s961
                %s951 = sphi %s800, %s964
                %s952 = sphi %s933, %s965
              $region123: #{actor_critic_forward.1} parent=119 // loop_header_branch
                %949 = sbr.rel (%p946) target = $region127
              $region124: #{actor_critic_forward.1} parent=119 // loop_body
                %v953 = vld [vmem:[%s951] sm:$0xff]
                %954 = vst [vmem:[%s952] sm:$0xff] %v953
                %v955 = vld [vmem:[%s951 + $0x8] sm:$0xff]
                %956 = vst [vmem:[%s952 + $0x8] sm:$0xff] %v955
                %v957 = vld [vmem:[%s951 + $0x10] sm:$0xff]
                %958 = vst [vmem:[%s952 + $0x10] sm:$0xff] %v957
                %s959 = sadd.s32 1, %s950
                %p960 = scmp.ge.s32.totalorder %s959, %s942
                %s961 = scalar_select %p960, 0, %s959
                %s962 = smul.u32 %s961, 24
                %s963 = smul.u32 %s961, 24
                %s964 = scalar_lea.vmem %s800, %s962 [#allocation3]
                %s965 = scalar_lea.vmem %s933, %s963
              $region125: #{actor_critic_forward.1} parent=119 // loop_footer
                %s947 = sadd.s32 %s945, 1
              $region126: #{actor_critic_forward.1} parent=119 // loop_footer_branch
                %944 = sbr.rel target = $region122
              $region127: #{actor_critic_forward.1} parent=119 // loop_exit
                _
              %s966 = sdiv.u32.pop %s929, 3
              %s967 = srem.u32.pop %s929, 3
              %s968 = smul.u32 %s966, 3
              %s969 = smul.u32 8, %s968
              %s970 = scalar_lea.vmem %s800, %s969 [#allocation3]
              %s971 = smul.u32 8, %s968
              %s972 = scalar_lea.vmem %s933, %s971
              // While loop
              $region128: #{actor_critic_forward.1} parent=119 // loop_pre_header
                _
              $region129: #{actor_critic_forward.1} parent=119 // loop_header
                %s974 = sphi 0, %s976
                %p975 = scmp.ge.s32.totalorder %s974, %s967
                %s979 = sphi 0, %s986
                %s980 = sphi %s970, %s989
                %s981 = sphi %s972, %s990
              $region130: #{actor_critic_forward.1} parent=119 // loop_header_branch
                %978 = sbr.rel (%p975) target = $region134
              $region131: #{actor_critic_forward.1} parent=119 // loop_body
                %v982 = vld [vmem:[%s980] sm:$0xff]
                %983 = vst [vmem:[%s981] sm:$0xff] %v982
                %s984 = sadd.s32 1, %s979
                %p985 = scmp.ge.s32.totalorder %s984, %s967
                %s986 = scalar_select %p985, 0, %s984
                %s987 = smul.u32 %s986, 8
                %s988 = smul.u32 %s986, 8
                %s989 = scalar_lea.vmem %s970, %s987 [#allocation3]
                %s990 = scalar_lea.vmem %s972, %s988
              $region132: #{actor_critic_forward.1} parent=119 // loop_footer
                %s976 = sadd.s32 %s974, 1
              $region133: #{actor_critic_forward.1} parent=119 // loop_footer_branch
                %973 = sbr.rel target = $region129
              $region134: #{actor_critic_forward.1} parent=119 // loop_exit
                _
            $region120: #{actor_critic_forward.1} parent=111 // pred_fallthru
              _
          $region112: #{actor_critic_forward.1} parent=107 // pred_fallthru
            _
          %1044 = vnop
        $region108: #{actor_critic_forward.1} parent=51 // pred_fallthru
          _
      $region52: #{actor_critic_forward.1} parent=5 // pred_fallthru
        _
      %p1045 = scmp.le.s32.totalorder 2, %s16
      // Predicated region
      $region157: #{actor_critic_forward.1} parent=5 // pred_check
        %p1046 = pneg %p1045
      $region158: #{actor_critic_forward.1} parent=5 // pred_check_branch
        %1048 = sbr.rel (%p1046) target = $region160
      $region159: #{actor_critic_forward.1} parent=5 // pred_region
        %s1049 = ssub.s32 %s16, 2
        // Predicated region
        $region161: #{actor_critic_forward.1} parent=159 // pred_check
          %p1050 = pneg %p223
        $region162: #{actor_critic_forward.1} parent=159 // pred_check_branch
          %1052 = sbr.rel (%p1050) target = $region164
        $region163: #{actor_critic_forward.1} parent=159 // pred_region
          %s1053 = sand.u32 %s208, 1
          %s1054 = sand.u32 %s208, 1
          %s1055 = smul.addr %s1054, 24
          %s1056 = scalar_lea.vmem [#allocation2], %s1055
        $region164: #{actor_critic_forward.1} parent=159 // pred_fallthru
          _
        // Predicated region
        $region165: #{actor_critic_forward.1} parent=159 // pred_check
          %p1057 = pneg %p249
        $region166: #{actor_critic_forward.1} parent=159 // pred_check_branch
          %1059 = sbr.rel (%p1057) target = $region168
        $region167: #{actor_critic_forward.1} parent=159 // pred_region
          %s1060 = sand.u32 %s234, 1
          %s1061 = sand.u32 %s234, 1
          %s1062 = smul.addr %s1061, 24
          %s1063 = scalar_lea.vmem [#allocation3], %s1062
        $region168: #{actor_critic_forward.1} parent=159 // pred_fallthru
          _
      $region160: #{actor_critic_forward.1} parent=5 // pred_fallthru
        _
    $region6: #{actor_critic_forward.1} parent=1 // loop_footer
      %s20 = sadd.s32 1, %s16
    $region7: #{actor_critic_forward.1} parent=1 // loop_footer_branch
      %15 = sbr.rel target = $region3
    $region8: #{actor_critic_forward.1} parent=1 // loop_exit
      _

</llo_original>
